<compile_context>
chip_gen: v7x
topology: tpu7x:2x2x1
jax: 0.10.0
libtpu: 0.0.40
codegen_flags: <defaults>
</compile_context>

<pallas_src>
import functools
import math

import jax
import jax.numpy as jnp
from jax import lax
from jax.experimental import pallas as pl
from jax.experimental.pallas import tpu as pltpu


_LANE = 128
_SUBLANE = 8
_MIB = 1024 * 1024


def _round_up(x, m):
    return ((x + m - 1) // m) * m


# ----------------------- generation-aware VMEM budgets -----------------------
def _tpu_vmem_capacity_bytes():
    try:
        info = pltpu.get_tpu_info()
        cap = int(getattr(info, "vmem_capacity_bytes", 0) or 0)
        if cap > 0:
            return cap
    except Exception:
        pass
    return 64 * _MIB  # conservative default (v7x per-TC VMEM)


_VMEM_CAP = _tpu_vmem_capacity_bytes()
# Scoped-VMEM ceiling handed to Mosaic, and the soft budget the tile pickers aim
# for (gap covers compiler-internal scratch and the Buffered(1) fallback).
_VMEM_LIMIT = max(32 * _MIB, int(_VMEM_CAP * 0.75))    # ~96 MiB on 128 MiB parts, 48 MiB on v7x
_VMEM_BUDGET = max(24 * _MIB, int(_VMEM_CAP * 0.625))  # ~80 MiB / 40 MiB


def _supports_buffered_blockspec():
    try:
        pl.BlockSpec((_SUBLANE, _LANE), lambda i: (0, 0), pipeline_mode=pl.Buffered(1))
        return True
    except (TypeError, AttributeError):
        return False


_HAS_BUFFERED = _supports_buffered_blockspec()


def _bf16_transcendentals_ok():
    # v6e/v7x EUP is bf16-native; v5e and older are not (casts would just add work).
    try:
        kind = jax.devices()[0].device_kind.lower()
    except Exception:
        return False
    return not any(v in kind for v in ("v2", "v3", "v4", "v5"))


_BF16_TRIG = _bf16_transcendentals_ok()


# ----------------------------- transform kernel -----------------------------
def _rff_transform_kernel(x_ref, w_ref, o_ref, *, nc, ncp, scale, bf16_trig):
    # projection = X_tile @ W on the MXU, f32 accumulation.
    proj = jnp.dot(x_ref[...], w_ref[...], preferred_element_type=jnp.float32)
    if bf16_trig:
        # bf16 EUP: packed vregs -> ~2x transcendental throughput (v6e/v7x only).
        proj = proj.astype(jnp.bfloat16)
    cosv = jnp.cos(proj)
    sinv = jnp.sin(proj)
    if scale != 1.0:
        s = jnp.asarray(scale, dtype=cosv.dtype)
        cosv = cosv * s
        sinv = sinv * s
    if nc != ncp:
        # Zero the padded cos lanes (cos(0)=1, not 0!) so the padded proj can be
        # fed straight to the Gram stage without a wrapper-side concatenate.
        col = lax.broadcasted_iota(jnp.int32, cosv.shape, 1)
        cosv = jnp.where(col < nc, cosv, jnp.zeros_like(cosv))
        # sin pads are already zero: padded W columns are 0 -> proj = 0 -> sin(0) = 0.
    # ncp is a multiple of 128, so both stores are lane-aligned, unmasked vst's.
    o_ref[:, :ncp] = cosv.astype(o_ref.dtype)
    o_ref[:, ncp:] = sinv.astype(o_ref.dtype)


def _pick_transform_tile(n_rows, feature_dim, ncp, x_bytes, w_bytes, o_bytes):
    """Largest power-of-two row tile (<=512) whose pipeline buffers fit VMEM."""
    w_bufs = 1 if _HAS_BUFFERED else 2   # W single-buffered when Buffered(1) is available

    def vmem_bytes(t):
        x_buf = 2 * t * feature_dim * x_bytes        # double-buffered X tile
        w_buf = w_bufs * feature_dim * ncp * w_bytes  # grid-invariant W
        o_buf = 2 * t * 2 * ncp * o_bytes             # double-buffered [cos|sin] tile
        return x_buf + w_buf + o_buf

    cap = _round_up(max(n_rows, 1), _SUBLANE)
    t = 512   # transform is HBM-write bound: bigger tiles -> higher roofline util
    while t > _SUBLANE and (vmem_bytes(t) > _VMEM_BUDGET or t > cap):
        t //= 2
    return t


def _rff_transform_padded(x, w, out_dtype, *, apply_scale=True):
    """Runs the transform kernel on row/lane padded operands.

    Returns (out_padded, n_rows, n_components, n_components_padded) where
    out_padded has shape (padded_rows, 2 * ncp): cos block in columns [:ncp]
    (padded cos lanes zeroed in-kernel), sin block in columns [ncp:].
    """
    n, fd = x.shape
    fd2, nc = w.shape
    assert fd2 == fd, "X feature dim must match random_weights_ rows"

    ncp = _round_up(nc, _LANE)                     # lane-align cos/sin stores
    x_bytes = jnp.dtype(x.dtype).itemsize
    w_bytes = jnp.dtype(w.dtype).itemsize
    o_bytes = jnp.dtype(out_dtype).itemsize
    tm = _pick_transform_tile(n, fd, ncp, x_bytes, w_bytes, o_bytes)
    n_pad = _round_up(max(n, 1), tm)

    xp = x if n_pad == n else jnp.pad(x, ((0, n_pad - n), (0, 0)))
    wp = w if ncp == nc else jnp.pad(w, ((0, 0), (0, ncp - nc)))

    bf16_trig = _BF16_TRIG and jnp.dtype(out_dtype) == jnp.dtype(jnp.bfloat16)
    scale = (1.0 / math.sqrt(nc)) if apply_scale else 1.0
    kernel = functools.partial(_rff_transform_kernel, nc=nc, ncp=ncp,
                               scale=scale, bf16_trig=bf16_trig)

    # TODO(synk): for very large fd * n_components (W alone near the VMEM budget,
    # mainly v7x), add a second grid axis tiling n_components (split cos/sin into
    # two (n, ncp) outputs so the nc-tile maps cleanly), or stream W as bf16.

    def run(use_buffered):
        w_kwargs = {"pipeline_mode": pl.Buffered(1)} if use_buffered else {}
        return pl.pallas_call(
            kernel,
            out_shape=jax.ShapeDtypeStruct((n_pad, 2 * ncp), out_dtype),
            grid_spec=pltpu.PrefetchScalarGridSpec(
                num_scalar_prefetch=0,
                grid=(n_pad // tm,),
                in_specs=[
                    pl.BlockSpec((tm, fd), lambda i: (i, 0)),
                    # W is grid-invariant: single-buffer it to reclaim VMEM.
                    pl.BlockSpec((fd, ncp), lambda i: (0, 0), **w_kwargs),
                ],
                out_specs=pl.BlockSpec((tm, 2 * ncp), lambda i: (i, 0)),
            ),
            compiler_params=pltpu.CompilerParams(
                dimension_semantics=("parallel",),
                vmem_limit_bytes=_VMEM_LIMIT,
            ),
        )(xp, wp)

    if _HAS_BUFFERED:
        try:
            out = run(True)
        except (TypeError, ValueError, NotImplementedError, pltpu.LoweringException):
            # Narrow fallback: only Buffered(1)/pipeline_mode rejections land here;
            # identical semantics, W just stays default double-buffered.
            out = run(False)
    else:
        out = run(False)
    return out, n, nc, ncp


def rff_transform(x, w, *, out_dtype=jnp.float32):
    """x: (n_samples, feature_dim), w: (feature_dim, n_components)
    -> (n_samples, 2*n_components): [cos(XW) | sin(XW)] / sqrt(n_components)."""
    out, n, nc, ncp = _rff_transform_padded(x, w, out_dtype, apply_scale=True)
    if ncp == nc:
        return out[:n]
    # n_components not lane-aligned: strip the zero-padded columns.
    return jnp.concatenate([out[:n, :nc], out[:n, ncp:ncp + nc]], axis=1)


# --------------------------- kernel-matrix kernel ---------------------------
def _gram_kernel(a_ref, b_ref, o_ref, acc_ref, *, out_scale):
    @pl.when(pl.program_id(2) == 0)
    def _():
        acc_ref[...] = jnp.zeros_like(acc_ref)

    # K_tile += A_tile @ B_tile^T via dot_general contracting dim 1 of both
    # operands (no explicit transpose / XLU relayout). bf16 operands hit the
    # bf16-native MXU path; accumulation stays f32 in the VMEM scratch.
    acc_ref[...] += lax.dot_general(
        a_ref[...], b_ref[...],
        dimension_numbers=(((1,), (1,)), ((), ())),
        preferred_element_type=jnp.float32,
    )

    @pl.when(pl.program_id(2) == pl.num_programs(2) - 1)
    def _():
        acc = acc_ref[...]
        if out_scale != 1.0:
            acc = acc * jnp.float32(out_scale)
        o_ref[...] = acc.astype(o_ref.dtype)


def _pick_gram_tiles(rows, d2, elem_bytes):
    """Pick (output tile t, reduction tile tk) fitting the VMEM budget."""
    def fits(t, tk):
        in_buf = 2 * 2 * t * tk * elem_bytes   # two row-block operands, double-buffered
        out_buf = 2 * t * t * 4                # f32 output tile, double-buffered
        acc_buf = t * t * 4                    # f32 accumulator scratch
        return in_buf + out_buf + acc_buf <= _VMEM_BUDGET

    row_cap = _round_up(max(rows, 1), _SUBLANE)
    t_cands = [t for t in (512, 256, 128) if t <= row_cap] or [row_cap]
    if d2 % _LANE == 0:
        k_cands = [k for k in range(d2, 0, -_LANE) if d2 % k == 0]  # descending divisors
    else:
        k_cands = [d2]
    for t in t_cands:
        for tk in k_cands:
            if fits(t, tk):
                return t, tk
    return t_cands[-1], k_cands[-1]


def _gram(proj, *, out_scale=1.0):
    """proj: (rows, d2) -> out_scale * proj @ proj.T (f32), tiled over both output
    axes with a d2-reduction axis and an f32 VMEM accumulator."""
    rows, d2 = proj.shape
    t, tk = _pick_gram_tiles(rows, d2, jnp.dtype(proj.dtype).itemsize)
    rp = _round_up(max(rows, 1), t)
    p = proj if rp == rows else jnp.pad(proj, ((0, rp - rows), (0, 0)))

    # TODO(synk): exploit symmetry (compute only block-upper-triangle tiles via a
    # scalar-prefetched (i, j) block list and mirror in the wrapper) to halve MXU
    # work and operand DMA on this stage.
    kernel = functools.partial(_gram_kernel, out_scale=out_scale)
    out = pl.pallas_call(
        kernel,
        out_shape=jax.ShapeDtypeStruct((rp, rp), jnp.float32),
        grid_spec=pltpu.PrefetchScalarGridSpec(
            num_scalar_prefetch=0,
            grid=(rp // t, rp // t, d2 // tk),
            in_specs=[
                pl.BlockSpec((t, tk), lambda i, j, k: (i, k)),
                pl.BlockSpec((t, tk), lambda i, j, k: (j, k)),
            ],
            out_specs=pl.BlockSpec((t, t), lambda i, j, k: (i, j)),
            scratch_shapes=[pltpu.VMEM((t, t), jnp.float32)],
        ),
        compiler_params=pltpu.CompilerParams(
            dimension_semantics=("parallel", "parallel", "arbitrary"),
            vmem_limit_bytes=_VMEM_LIMIT,
        ),
    )(p, p)
    return out[:rows, :rows]


def rff_compute_kernel(x, w, *, proj_dtype=jnp.bfloat16):
    """Approximated kernel matrix K = transform(X) @ transform(X).T.

    proj_dtype=bfloat16 (default) halves the HBM round-trip of the [cos|sin]
    intermediate and feeds the bf16-native MXU on the Gram stage (accumulation
    stays f32).  Pass proj_dtype=jnp.float32 for a full-precision Phi."""
    n = x.shape[0]
    # 1/sqrt(nc) scaling is deferred: the Gram output tile is scaled by 1/nc
    # instead (one mul per K element vs two per feature element).
    out, _, nc, _ = _rff_transform_padded(x, w, proj_dtype, apply_scale=False)
    # Padded cos lanes are zeroed in-kernel and padded rows only touch K rows/cols
    # >= n (the contraction is over the feature axis), so the padded proj feeds the
    # Gram directly — no wrapper-level concatenate / extra HBM round-trip.
    # TODO(synk): for small/medium n where a proj row-block pair fits VMEM, fuse
    # transform + Gram into one pallas_call to remove the proj HBM round-trip.
    K = _gram(out, out_scale=1.0 / nc)
    return K[:n, :n]


# ------------------------------ module wrapper ------------------------------
class RFFPersoPallas:
    """JAX/Pallas port of RFF_perso (rbf kernel). forward() is a no-op."""

    def __init__(self, sigma=1.0, n_components=100, random_state=0, kernel="rbf"):
        assert kernel == "rbf", "only rbf supported here"
        # TODO(synk): 'laplacian'/'cauchy' weight sampling (scipy.stats rvs) not ported.
        self.sigma = sigma
        self.n_components = n_components
        self.random_state = random_state
        self.random_weights_ = None

    def fit(self, feature_dim):
        key = jax.random.PRNGKey(self.random_state)
        # 1/sigma * randn(feature_dim, n_components)
        self.random_weights_ = (1.0 / self.sigma) * jax.random.normal(
            key, (feature_dim, self.n_components), dtype=jnp.float32)
        return self

    def transform(self, x):
        return rff_transform(x, self.random_weights_)

    def compute_kernel(self, x, proj_dtype=jnp.bfloat16):
        return rff_compute_kernel(x, self.random_weights_, proj_dtype=proj_dtype)

    def rf_map(self):
        return self.random_weights_


# --------------------------------- reference --------------------------------
def _transform_ref(x, w, n_components):
    proj = jnp.dot(x, w, precision=lax.Precision.HIGHEST)
    out = jnp.concatenate([jnp.cos(proj), jnp.sin(proj)], axis=1)
    return out * (1.0 / jnp.sqrt(jnp.float32(n_components)))


if __name__ == "__main__":
    def check(n_samples, feature_dim, n_components, seed):
        rff = RFFPersoPallas(sigma=1.0, n_components=n_components, random_state=seed)
        rff.fit(feature_dim)

        x = jax.random.normal(jax.random.PRNGKey(0),
                              (n_samples, feature_dim), dtype=jnp.float32)

        phi = jax.block_until_ready(rff.transform(x))
        K32 = jax.block_until_ready(rff.compute_kernel(x, proj_dtype=jnp.float32))
        Kbf = jax.block_until_ready(rff.compute_kernel(x))  # default bf16 proj path

        phi_ref = _transform_ref(x, rff.random_weights_, n_components)
        K_ref = jnp.dot(phi_ref, phi_ref.T, precision=lax.Precision.HIGHEST)

        assert phi.shape == (n_samples, 2 * n_components)
        assert K32.shape == (n_samples, n_samples)
        assert Kbf.shape == (n_samples, n_samples)
        assert jnp.allclose(phi, phi_ref, atol=1e-4, rtol=1e-4), "transform mismatch"
        assert jnp.allclose(K32, K_ref, atol=5e-4, rtol=5e-4), "f32 kernel mismatch"
        assert jnp.allclose(Kbf, K_ref, atol=3e-2, rtol=3e-2), "bf16 kernel mismatch"

    # lane-aligned n_components
    check(n_samples=16, feature_dim=32, n_components=128, seed=0)
    # unaligned rows / feature_dim / n_components (exercises all padding paths)
    check(n_samples=200, feature_dim=24, n_components=100, seed=1)

    print("KERNEL_OK")
</pallas_src>

<mosaic_0001>
module attributes {stable_mosaic.version = 11 : i64} {
  func.func @_rff_transform_kernel(%arg0: i32, %arg1: memref<16x32xf32, #tpu.memory_space<vmem>>, %arg2: memref<32x128xf32, #tpu.memory_space<vmem>>, %arg3: memref<16x256xf32, #tpu.memory_space<vmem>>) attributes {dimension_semantics = [#tpu.dimension_semantics<parallel>], iteration_bounds = array<i64: 1>, scalar_prefetch = 0 : i64, scratch_operands = 0 : i64, tpu.core_type = #tpu.core_type<tc>, window_params = [{transform_indices = @transform_0, window_bounds = array<i64: 16, 32>}, {pipeline_mode = #tpu.pipeline_mode<synchronous>, transform_indices = @transform_1, window_bounds = array<i64: 32, 128>}, {transform_indices = @transform_2, window_bounds = array<i64: 16, 256>}]} {
    %c0 = arith.constant 0 : index
    %c0_0 = arith.constant 0 : index
    %0 = vector.load %arg1[%c0, %c0_0] : memref<16x32xf32, #tpu.memory_space<vmem>>, vector<16x32xf32>
    %c0_1 = arith.constant 0 : index
    %c0_2 = arith.constant 0 : index
    %1 = vector.load %arg2[%c0_1, %c0_2] : memref<32x128xf32, #tpu.memory_space<vmem>>, vector<32x128xf32>
    %cst = arith.constant dense<0.000000e+00> : vector<16x128xf32>
    %2 = tpu.matmul %0, %1, %cst {dimension_numbers = #tpu.dot_dimension_numbers<[1], [0], [0], [1], [0, 0, 1, 1], [], []>} : vector<16x32xf32>, vector<32x128xf32>, vector<16x128xf32> -> vector<16x128xf32>
    %3 = math.cos %2 : vector<16x128xf32>
    %4 = math.sin %2 : vector<16x128xf32>
    %cst_3 = arith.constant 0.0883883461 : f32
    %5 = vector.broadcast %cst_3 : f32 to vector<16x128xf32>
    %6 = arith.mulf %3, %5 : vector<16x128xf32>
    %cst_4 = arith.constant 0.0883883461 : f32
    %7 = vector.broadcast %cst_4 : f32 to vector<16x128xf32>
    %8 = arith.mulf %4, %7 : vector<16x128xf32>
    %c0_5 = arith.constant 0 : index
    %c0_6 = arith.constant 0 : index
    %9 = vector.load %arg3[%c0_5, %c0_6] : memref<16x256xf32, #tpu.memory_space<vmem>>, vector<16x128xf32>
    tpu.vector_store %arg3[%c0_5, %c0_6], %6 {strides = array<i32>} : memref<16x256xf32, #tpu.memory_space<vmem>>, vector<16x128xf32>,
    %c0_7 = arith.constant 0 : index
    %c128 = arith.constant 128 : index
    %10 = vector.load %arg3[%c0_7, %c128] : memref<16x256xf32, #tpu.memory_space<vmem>>, vector<16x128xf32>
    tpu.vector_store %arg3[%c0_7, %c128], %8 {strides = array<i32>} : memref<16x256xf32, #tpu.memory_space<vmem>>, vector<16x128xf32>,
    return
  }
  func.func @transform_0(%arg0: i32) -> (i32, i32) {
    %c0_i32 = arith.constant 0 : i32
    %c0_i32_0 = arith.constant 0 : i32
    return %arg0, %c0_i32 : i32, i32
  }
  func.func @transform_1(%arg0: i32) -> (i32, i32) {
    %c0_i32 = arith.constant 0 : i32
    %c0_i32_0 = arith.constant 0 : i32
    %c0_i32_1 = arith.constant 0 : i32
    return %c0_i32, %c0_i32_0 : i32, i32
  }
  func.func @transform_2(%arg0: i32) -> (i32, i32) {
    %c0_i32 = arith.constant 0 : i32
    %c0_i32_0 = arith.constant 0 : i32
    return %arg0, %c0_i32 : i32, i32
  }
}

</mosaic_0001>

<llo_original>
// kernel: tpu_custom_call.1
$region0: #{tpu_custom_call.1}
  #allocation0 [shape = 'u32[]', space=smem, size = 0x4, offset = 0x4, fixed_abs, tag = 'smem constant byte address 0x4 - core index']
  #allocation1 [shape = 'u32[144,128]{1,0:T(1,128)}', space=vmem, size = 0x12000, scoped, tag = 'internal scratch']
  %s0 = inlined_call_operand.hbm [shape: f32[16,32], index: 0, kind: input, shape index: {}]
  %s1 = inlined_call_operand.hbm [shape: f32[32,128], index: 1, kind: input, shape index: {}]
  %s2 = inlined_call_operand.hbm [shape: f32[16,256], index: 2, kind: output, shape index: {}]
  %s3 = sld [smem:[#allocation0]]
  $region26: #{tpu_custom_call.1} parent=0
    _
  %s5 = ssub.s32 1, %s3
  %s6 = scalar_select 0, %s5, %s3
  $region1: #{tpu_custom_call.1} parent=0
    #allocation2 [shape = 'u8[8192]{0}', space=vmem, size = 0x2000, scoped, tag = 'input window, operand 0, single buffered']
    #allocation3 [shape = 's32[1]{0}', space=sflag, size = 0x4, scoped, tag = 'scoped memory for tpu_custom_call.1']
    #allocation4 [shape = 's32[1]{0}', space=sflag, size = 0x4, scoped, tag = 'scoped memory for tpu_custom_call.1']
    #allocation5 [shape = 'u8[16384]{0}', space=vmem, size = 0x4000, scoped, tag = 'input window, operand 1, single buffered']
    #allocation6 [shape = 's32[1]{0}', space=sflag, size = 0x4, scoped, tag = 'scoped memory for tpu_custom_call.1']
    #allocation7 [shape = 'u8[16384]{0}', space=vmem, size = 0x4000, scoped, tag = 'output window, operand 0, single buffered']
    %7 = vsyncpa [#allocation3], 0
    %8 = vsyncpa [#allocation6], 0
    %9 = vsyncpa [#allocation4], 0
    // Predicated region
    $region2: #{tpu_custom_call.1} parent=1 // pred_check
      _
    $region3: #{tpu_custom_call.1} parent=1 // pred_check_branch
      %11 = sbr.rel (0) target = $region5
    $region4: #{tpu_custom_call.1} parent=1 // pred_region
      %s13 = ssub.s32 256, 256
      %14 = vsyncadd [#allocation3], %s13
      %s15 = sshll.u32 [#allocation2], 4
      %s16 = int_to_ptr.vmem [resolvable:$true] %s15
      %21 = dma.hbm_to_vmem [thread:$0]  %s0, 256, %s16, [#allocation3], 128, 128, 8
    $region5: #{tpu_custom_call.1} parent=1 // pred_fallthru
      _
    // Predicated region
    $region6: #{tpu_custom_call.1} parent=1 // pred_check
      _
    $region7: #{tpu_custom_call.1} parent=1 // pred_check_branch
      %23 = sbr.rel (0) target = $region9
    $region8: #{tpu_custom_call.1} parent=1 // pred_region
      %s25 = ssub.s32 512, 512
      %26 = vsyncadd [#allocation6], %s25
      %s27 = sshll.u32 [#allocation5], 4
      %s28 = int_to_ptr.vmem [resolvable:$true] %s27
      %33 = dma.hbm_to_vmem [thread:$0]  %s1, 512, %s28, [#allocation6], 128, 128, 8
    $region9: #{tpu_custom_call.1} parent=1 // pred_fallthru
      _
    // Predicated region
    $region10: #{tpu_custom_call.1} parent=1 // pred_check
      _
    $region11: #{tpu_custom_call.1} parent=1 // pred_check_branch
      %35 = sbr.rel (0) target = $region13
    $region12: #{tpu_custom_call.1} parent=1 // pred_region
      %36 = dma.done [#allocation3], 256
    $region13: #{tpu_custom_call.1} parent=1 // pred_fallthru
      _
    // Predicated region
    $region14: #{tpu_custom_call.1} parent=1 // pred_check
      _
    $region15: #{tpu_custom_call.1} parent=1 // pred_check_branch
      %38 = sbr.rel (0) target = $region17
    $region16: #{tpu_custom_call.1} parent=1 // pred_region
      %39 = dma.done [#allocation6], 512
    $region17: #{tpu_custom_call.1} parent=1 // pred_fallthru
      _
    %v40 = vld [vmem:[#allocation2] sm:$0xff]
    %v41 = vld [vmem:[#allocation2 + $0x8] sm:$0xff]
    %v42 = vld [vmem:[#allocation5] sm:$0xff]
    %v43 = vld [vmem:[#allocation5 + $0x8] sm:$0xff]
    %v44 = vld [vmem:[#allocation5 + $0x10] sm:$0xff]
    %v45 = vld [vmem:[#allocation5 + $0x18] sm:$0xff]
    %vm46 = vcmask 261120
    %v48 = vsel %vm46, %v40, 0
    %v51 = vsel %vm46, %v41, 0
    %53 = vmatprep.subr.mxu0 0.0
    %54 = vmatpush1.msra.mxu0 %v42
    %55 = vmatprep.subr.mxu0 0.0
    %56 = vmatpush1.msra.mxu0 %v43
    %57 = vmatprep.subr.mxu0 0.0
    %58 = vmatpush1.msra.mxu0 %v44
    %59 = vmatprep.subr.mxu0 0.0
    %60 = vmatpush1.msra.mxu0 %v45
    %61 = vmatprep.subr.mxu0 0.0
    %62 = vmatpush1.msra.mxu0 0.0
    %63 = vmatprep.subr.mxu0 0.0
    %64 = vmatpush1.msra.mxu0 0.0
    %65 = vmatprep.subr.mxu0 0.0
    %66 = vmatpush1.msra.mxu0 0.0
    %67 = vmatprep.subr.mxu0 0.0
    %68 = vmatpush1.msra.mxu0 0.0
    %69 = vmatprep.subr.mxu0 0.0
    %70 = vmatpush1.msra.mxu0 0.0
    %71 = vmatprep.subr.mxu0 0.0
    %72 = vmatpush1.msra.mxu0 0.0
    %73 = vmatprep.subr.mxu0 0.0
    %74 = vmatpush1.msra.mxu0 0.0
    %75 = vmatprep.subr.mxu0 0.0
    %76 = vmatpush1.msra.mxu0 0.0
    %77 = vmatprep.subr.mxu0 0.0
    %78 = vmatpush1.msra.mxu0 0.0
    %79 = vmatprep.subr.mxu0 0.0
    %80 = vmatpush1.msra.mxu0 0.0
    %81 = vmatprep.subr.mxu0 0.0
    %82 = vmatpush1.msra.mxu0 0.0
    %83 = vmatprep.subr.mxu0 0.0
    %84 = vmatpush1.msra.mxu0 0.0
    %85 = vmatprep.subr.mxu0 0.0
    %86 = vmatpush1.msra.mxu0 0.0
    %87 = vmatprep.subr.mxu0 0.0
    %88 = vmatpush1.msra.mxu0 0.0
    %89 = vmatprep.subr.mxu0 0.0
    %90 = vmatpush1.msra.mxu0 0.0
    %91 = vmatprep.subr.mxu0 0.0
    %92 = vmatpush1.msra.mxu0 0.0
    %93 = vmatprep.subr.mxu0 0.0
    %94 = vmatpush1.msra.mxu0 0.0
    %95 = vmatprep.subr.mxu0 0.0
    %96 = vmatpush1.msra.mxu0 0.0
    %97 = vmatprep.subr.mxu0 0.0
    %98 = vmatpush1.msra.mxu0 0.0
    %99 = vmatprep.subr.mxu0 0.0
    %100 = vmatpush1.msra.mxu0 0.0
    %101 = vmatprep.subr.mxu0 0.0
    %102 = vmatpush1.msra.mxu0 0.0
    %103 = vmatprep.subr.mxu0 0.0
    %104 = vmatpush1.msra.mxu0 0.0
    %105 = vmatprep.subr.mxu0 0.0
    %106 = vmatpush1.msra.mxu0 0.0
    %107 = vmatprep.subr.mxu0 0.0
    %108 = vmatpush1.msra.mxu0 0.0
    %109 = vmatprep.subr.mxu0 0.0
    %110 = vmatpush1.msra.mxu0 0.0
    %111 = vmatprep.subr.mxu0 0.0
    %112 = vmatpush1.msra.mxu0 0.0
    %113 = vmatprep.subr.mxu0 0.0
    %114 = vmatpush1.msra.mxu0 0.0
    %115 = vmatprep.subr.mxu0 0.0
    %116 = vmatpush1.msra.mxu0 0.0
    %117 = vmatprep.mubr.f32.mxu0 0.0
    %118 = vmatmul.mubr.f32.gmra.mrb[0].mxu0 %v48
    %v119 = vpop.f32.mrb[0].mxu0
    %v120 = vadd.f32 0.0, %v119
    %v121 = vpop.f32.mrb[0].mxu0
    %122 = vmatprep.mubr.f32.mxu0 0.0
    %123 = vmatmul.mubr.f32.gmra.mrb[0].mxu0 %v51
    %v124 = vpop.f32.mrb[0].mxu0
    %v125 = vadd.f32 0.0, %v124
    %v126 = vpop.f32.mrb[0].mxu0
    %127 = vdwg.mxu0
    %v128 = vand.u32 2147483647, %v120
    %vm129 = vcmp.le.f32.partialorder %v128, 0.7853982
    %vm130 = vcmp.lt.s32.totalorder %v120, 0
    %v131 = vand.u32 %v120, 2139095040
    %v132 = vshrl.u32 %v131, 23
    %v133 = vsub.s32 %v132, 127
    %v134 = vand.u32 2147483647, %v120
    %v135 = vand.u32 %v134, 8388607
    %v136 = vor.u32 %v135, 8388608
    %v137 = vsub.s32 0, %v136
    %v138 = vadd.s32 %v133, 1
    %vm139 = vcmp.gt.s32.totalorder %v138, 0
    %v140 = vsel %vm139, %v138, 0
    %v141 = vshrl.u32 %v140, 5
    %v142 = vand.u32 %v140, 31
    %v143 = vsub.s32 32, %v142
    %v144 = vshrl.u32 683565275, %v143
    %v145 = vshll.u32 683565275, %v142
    %v146 = vshrl.u32 2475754826, %v143
    %v147 = vor.u32 %v145, %v146
    %v148 = vshll.u32 2475754826, %v142
    %v149 = vshrl.u32 2131351028, %v143
    %v150 = vor.u32 %v148, %v149
    %v151 = vshll.u32 2131351028, %v142
    %v152 = vshrl.u32 2102212464, %v143
    %v153 = vor.u32 %v151, %v152
    %v154 = vshll.u32 2102212464, %v142
    %v155 = vshrl.u32 920167782, %v143
    %v156 = vor.u32 %v154, %v155
    %v157 = vshll.u32 920167782, %v142
    %v158 = vshrl.u32 1326507024, %v143
    %v159 = vor.u32 %v157, %v158
    %vm160 = vcmp.lt.s32.totalorder %v141, 1
    %vm161 = vcmp.lt.s32.totalorder %v141, 2
    %vm162 = vcmp.lt.s32.totalorder %v141, 3
    %vm163 = vcmp.lt.s32.totalorder %v141, 4
    %v164 = vsel %vm160, %v144, %v147
    %v165 = vsel %vm163, %v153, 2102212464
    %v166 = vsel %vm162, %v150, %v165
    %v167 = vsel %vm161, %v164, %v166
    %v168 = vsel %vm160, %v147, %v150
    %v169 = vsel %vm163, %v156, 920167782
    %v170 = vsel %vm162, %v153, %v169
    %v171 = vsel %vm161, %v168, %v170
    %v172 = vsel %vm160, %v150, %v153
    %v173 = vsel %vm163, %v159, 1326507024
    %v174 = vsel %vm162, %v156, %v173
    %v175 = vsel %vm161, %v172, %v174
    %v176 = vshll.u32 %v136, 8
    %v177 = vmul.u32.u64.compose %v176, %v175
    %v178 = vextract.low.u32 %v177
    %v179 = vextract.high.u32 %v177
    %v180 = vmul.u32.u64.compose %v176, %v171
    %v181 = vextract.low.u32 %v180
    %v182 = vextract.high.u32 %v180
    %v183 = vmul.u32 %v176, %v167
    %v184 = vadd.s32 %v179, %v181
    %vm185 = vc.u32 %v179, %v181
    %v186 = vadd.s32 %v182, 1
    %v187 = vsel %vm185, %v186, %v182
    %v188 = vadd.s32 %v183, %v187
    %v189 = vadd.s32 %v188, 536870912
    %v190 = vshrl.u32 %v189, 30
    %v191 = vshll.u32 %v190, 30
    %v192 = vsub.s32 %v188, %v191
    %vm193 = vcmp.lt.s32.totalorder %v192, 0
    %v194 = vsub.s32 0, %v192
    %v195 = vsel %vm193, %v194, %v192
    %v196 = vclz %v195
    %v197 = vsub.s32 %v196, 2
    %vm198 = vcmp.gt.s32.totalorder 0, %v197
    %v199 = vsel %vm198, 0, %v197
    %v200 = vsub.s32 32, %v199
    %v201 = vshll.u32 %v192, %v199
    %v202 = vshrl.u32 %v184, %v200
    %v203 = vor.u32 %v201, %v202
    %v204 = vsub.s32 4294967266, %v199
    %v205 = vadd.s32 %v204, 127
    %v206 = vshll.u32 %v205, 23
    %v207 = vor.u32 4788187, %v206
    %v208 = vand.u32 2147483647, %v207
    %v210 = vcvt.s32.f32 %v203
    %v211 = vmul.f32 %v210, %v208
    %v212 = vxor.u32 %v211, 2147483648
    %v213 = vsel %vm130, %v212, %v211
    %v214 = vsub.s32 4, %v190
    %v215 = vsel %vm130, %v214, %v190
    %v216 = vsel %vm129, %v120, %v213
    %v217 = vsel %vm129, 0, %v215
    %v218 = vcosq.f32.pop %v216
    %v219 = vsinq.f32.pop %v216
    %vm220 = vweird.f32 %v120
    %v221 = vand.u32 %v217, 3
    %vm222 = vcmp.lt.s32.totalorder %v221, 2
    %vm223 = vcmp.eq.s32.totalorder %v221, 0
    %v224 = vxor.u32 %v219, 2147483648
    %v225 = vsel %vm223, %v218, %v224
    %vm226 = vcmp.eq.s32.totalorder %v221, 2
    %v227 = vxor.u32 %v218, 2147483648
    %v228 = vsel %vm226, %v227, %v219
    %v229 = vsel %vm222, %v225, %v228
    %v230 = vsel %vm220, nan, %v229
    %v231 = vand.u32 2147483647, %v125
    %vm232 = vcmp.le.f32.partialorder %v231, 0.7853982
    %vm233 = vcmp.lt.s32.totalorder %v125, 0
    %v234 = vand.u32 %v125, 2139095040
    %v235 = vshrl.u32 %v234, 23
    %v236 = vsub.s32 %v235, 127
    %v237 = vand.u32 2147483647, %v125
    %v238 = vand.u32 %v237, 8388607
    %v239 = vor.u32 %v238, 8388608
    %v240 = vsub.s32 0, %v239
    %v241 = vadd.s32 %v236, 1
    %vm242 = vcmp.gt.s32.totalorder %v241, 0
    %v243 = vsel %vm242, %v241, 0
    %v244 = vshrl.u32 %v243, 5
    %v245 = vand.u32 %v243, 31
    %v246 = vsub.s32 32, %v245
    %v247 = vshrl.u32 683565275, %v246
    %v248 = vshll.u32 683565275, %v245
    %v249 = vshrl.u32 2475754826, %v246
    %v250 = vor.u32 %v248, %v249
    %v251 = vshll.u32 2475754826, %v245
    %v252 = vshrl.u32 2131351028, %v246
    %v253 = vor.u32 %v251, %v252
    %v254 = vshll.u32 2131351028, %v245
    %v255 = vshrl.u32 2102212464, %v246
    %v256 = vor.u32 %v254, %v255
    %v257 = vshll.u32 2102212464, %v245
    %v258 = vshrl.u32 920167782, %v246
    %v259 = vor.u32 %v257, %v258
    %v260 = vshll.u32 920167782, %v245
    %v261 = vshrl.u32 1326507024, %v246
    %v262 = vor.u32 %v260, %v261
    %vm263 = vcmp.lt.s32.totalorder %v244, 1
    %vm264 = vcmp.lt.s32.totalorder %v244, 2
    %vm265 = vcmp.lt.s32.totalorder %v244, 3
    %vm266 = vcmp.lt.s32.totalorder %v244, 4
    %v267 = vsel %vm263, %v247, %v250
    %v268 = vsel %vm266, %v256, 2102212464
    %v269 = vsel %vm265, %v253, %v268
    %v270 = vsel %vm264, %v267, %v269
    %v271 = vsel %vm263, %v250, %v253
    %v272 = vsel %vm266, %v259, 920167782
    %v273 = vsel %vm265, %v256, %v272
    %v274 = vsel %vm264, %v271, %v273
    %v275 = vsel %vm263, %v253, %v256
    %v276 = vsel %vm266, %v262, 1326507024
    %v277 = vsel %vm265, %v259, %v276
    %v278 = vsel %vm264, %v275, %v277
    %v279 = vshll.u32 %v239, 8
    %v280 = vmul.u32.u64.compose %v279, %v278
    %v281 = vextract.low.u32 %v280
    %v282 = vextract.high.u32 %v280
    %v283 = vmul.u32.u64.compose %v279, %v274
    %v284 = vextract.low.u32 %v283
    %v285 = vextract.high.u32 %v283
    %v286 = vmul.u32 %v279, %v270
    %v287 = vadd.s32 %v282, %v284
    %vm288 = vc.u32 %v282, %v284
    %v289 = vadd.s32 %v285, 1
    %v290 = vsel %vm288, %v289, %v285
    %v291 = vadd.s32 %v286, %v290
    %v292 = vadd.s32 %v291, 536870912
    %v293 = vshrl.u32 %v292, 30
    %v294 = vshll.u32 %v293, 30
    %v295 = vsub.s32 %v291, %v294
    %vm296 = vcmp.lt.s32.totalorder %v295, 0
    %v297 = vsub.s32 0, %v295
    %v298 = vsel %vm296, %v297, %v295
    %v299 = vclz %v298
    %v300 = vsub.s32 %v299, 2
    %vm301 = vcmp.gt.s32.totalorder 0, %v300
    %v302 = vsel %vm301, 0, %v300
    %v303 = vsub.s32 32, %v302
    %v304 = vshll.u32 %v295, %v302
    %v305 = vshrl.u32 %v287, %v303
    %v306 = vor.u32 %v304, %v305
    %v307 = vsub.s32 4294967266, %v302
    %v308 = vadd.s32 %v307, 127
    %v309 = vshll.u32 %v308, 23
    %v310 = vor.u32 4788187, %v309
    %v311 = vand.u32 2147483647, %v310
    %v313 = vcvt.s32.f32 %v306
    %v314 = vmul.f32 %v313, %v311
    %v315 = vxor.u32 %v314, 2147483648
    %v316 = vsel %vm233, %v315, %v314
    %v317 = vsub.s32 4, %v293
    %v318 = vsel %vm233, %v317, %v293
    %v319 = vsel %vm232, %v125, %v316
    %v320 = vsel %vm232, 0, %v318
    %v321 = vcosq.f32.pop %v319
    %v322 = vsinq.f32.pop %v319
    %vm323 = vweird.f32 %v125
    %v324 = vand.u32 %v320, 3
    %vm325 = vcmp.lt.s32.totalorder %v324, 2
    %vm326 = vcmp.eq.s32.totalorder %v324, 0
    %v327 = vxor.u32 %v322, 2147483648
    %v328 = vsel %vm326, %v321, %v327
    %vm329 = vcmp.eq.s32.totalorder %v324, 2
    %v330 = vxor.u32 %v321, 2147483648
    %v331 = vsel %vm329, %v330, %v322
    %v332 = vsel %vm325, %v328, %v331
    %v333 = vsel %vm323, nan, %v332
    %v334 = vand.u32 2147483647, %v120
    %vm335 = vcmp.le.f32.partialorder %v334, 0.7853982
    %vm336 = vcmp.lt.s32.totalorder %v120, 0
    %v337 = vand.u32 %v120, 2139095040
    %v338 = vshrl.u32 %v337, 23
    %v339 = vsub.s32 %v338, 127
    %v340 = vand.u32 2147483647, %v120
    %v341 = vand.u32 %v340, 8388607
    %v342 = vor.u32 %v341, 8388608
    %v343 = vsub.s32 0, %v342
    %v344 = vadd.s32 %v339, 1
    %vm345 = vcmp.gt.s32.totalorder %v344, 0
    %v346 = vsel %vm345, %v344, 0
    %v347 = vshrl.u32 %v346, 5
    %v348 = vand.u32 %v346, 31
    %v349 = vsub.s32 32, %v348
    %v350 = vshrl.u32 683565275, %v349
    %v351 = vshll.u32 683565275, %v348
    %v352 = vshrl.u32 2475754826, %v349
    %v353 = vor.u32 %v351, %v352
    %v354 = vshll.u32 2475754826, %v348
    %v355 = vshrl.u32 2131351028, %v349
    %v356 = vor.u32 %v354, %v355
    %v357 = vshll.u32 2131351028, %v348
    %v358 = vshrl.u32 2102212464, %v349
    %v359 = vor.u32 %v357, %v358
    %v360 = vshll.u32 2102212464, %v348
    %v361 = vshrl.u32 920167782, %v349
    %v362 = vor.u32 %v360, %v361
    %v363 = vshll.u32 920167782, %v348
    %v364 = vshrl.u32 1326507024, %v349
    %v365 = vor.u32 %v363, %v364
    %vm366 = vcmp.lt.s32.totalorder %v347, 1
    %vm367 = vcmp.lt.s32.totalorder %v347, 2
    %vm368 = vcmp.lt.s32.totalorder %v347, 3
    %vm369 = vcmp.lt.s32.totalorder %v347, 4
    %v370 = vsel %vm366, %v350, %v353
    %v371 = vsel %vm369, %v359, 2102212464
    %v372 = vsel %vm368, %v356, %v371
    %v373 = vsel %vm367, %v370, %v372
    %v374 = vsel %vm366, %v353, %v356
    %v375 = vsel %vm369, %v362, 920167782
    %v376 = vsel %vm368, %v359, %v375
    %v377 = vsel %vm367, %v374, %v376
    %v378 = vsel %vm366, %v356, %v359
    %v379 = vsel %vm369, %v365, 1326507024
    %v380 = vsel %vm368, %v362, %v379
    %v381 = vsel %vm367, %v378, %v380
    %v382 = vshll.u32 %v342, 8
    %v383 = vmul.u32.u64.compose %v382, %v381
    %v384 = vextract.low.u32 %v383
    %v385 = vextract.high.u32 %v383
    %v386 = vmul.u32.u64.compose %v382, %v377
    %v387 = vextract.low.u32 %v386
    %v388 = vextract.high.u32 %v386
    %v389 = vmul.u32 %v382, %v373
    %v390 = vadd.s32 %v385, %v387
    %vm391 = vc.u32 %v385, %v387
    %v392 = vadd.s32 %v388, 1
    %v393 = vsel %vm391, %v392, %v388
    %v394 = vadd.s32 %v389, %v393
    %v395 = vadd.s32 %v394, 536870912
    %v396 = vshrl.u32 %v395, 30
    %v397 = vshll.u32 %v396, 30
    %v398 = vsub.s32 %v394, %v397
    %vm399 = vcmp.lt.s32.totalorder %v398, 0
    %v400 = vsub.s32 0, %v398
    %v401 = vsel %vm399, %v400, %v398
    %v402 = vclz %v401
    %v403 = vsub.s32 %v402, 2
    %vm404 = vcmp.gt.s32.totalorder 0, %v403
    %v405 = vsel %vm404, 0, %v403
    %v406 = vsub.s32 32, %v405
    %v407 = vshll.u32 %v398, %v405
    %v408 = vshrl.u32 %v390, %v406
    %v409 = vor.u32 %v407, %v408
    %v410 = vsub.s32 4294967266, %v405
    %v411 = vadd.s32 %v410, 127
    %v412 = vshll.u32 %v411, 23
    %v413 = vor.u32 4788187, %v412
    %v414 = vand.u32 2147483647, %v413
    %v416 = vcvt.s32.f32 %v409
    %v417 = vmul.f32 %v416, %v414
    %v418 = vxor.u32 %v417, 2147483648
    %v419 = vsel %vm336, %v418, %v417
    %v420 = vsub.s32 4, %v396
    %v421 = vsel %vm336, %v420, %v396
    %v422 = vsel %vm335, %v120, %v419
    %v423 = vsel %vm335, 0, %v421
    %v424 = vcosq.f32.pop %v422
    %v425 = vsinq.f32.pop %v422
    %vm426 = vweird.f32 %v120
    %v427 = vadd.s32 %v423, 3
    %v428 = vand.u32 %v427, 3
    %vm429 = vcmp.lt.s32.totalorder %v428, 2
    %vm430 = vcmp.eq.s32.totalorder %v428, 0
    %v431 = vxor.u32 %v425, 2147483648
    %v432 = vsel %vm430, %v424, %v431
    %vm433 = vcmp.eq.s32.totalorder %v428, 2
    %v434 = vxor.u32 %v424, 2147483648
    %v435 = vsel %vm433, %v434, %v425
    %v436 = vsel %vm429, %v432, %v435
    %v437 = vsel %vm426, nan, %v436
    %v438 = vand.u32 2147483647, %v125
    %vm439 = vcmp.le.f32.partialorder %v438, 0.7853982
    %vm440 = vcmp.lt.s32.totalorder %v125, 0
    %v441 = vand.u32 %v125, 2139095040
    %v442 = vshrl.u32 %v441, 23
    %v443 = vsub.s32 %v442, 127
    %v444 = vand.u32 2147483647, %v125
    %v445 = vand.u32 %v444, 8388607
    %v446 = vor.u32 %v445, 8388608
    %v447 = vsub.s32 0, %v446
    %v448 = vadd.s32 %v443, 1
    %vm449 = vcmp.gt.s32.totalorder %v448, 0
    %v450 = vsel %vm449, %v448, 0
    %v451 = vshrl.u32 %v450, 5
    %v452 = vand.u32 %v450, 31
    %v453 = vsub.s32 32, %v452
    %v454 = vshrl.u32 683565275, %v453
    %v455 = vshll.u32 683565275, %v452
    %v456 = vshrl.u32 2475754826, %v453
    %v457 = vor.u32 %v455, %v456
    %v458 = vshll.u32 2475754826, %v452
    %v459 = vshrl.u32 2131351028, %v453
    %v460 = vor.u32 %v458, %v459
    %v461 = vshll.u32 2131351028, %v452
    %v462 = vshrl.u32 2102212464, %v453
    %v463 = vor.u32 %v461, %v462
    %v464 = vshll.u32 2102212464, %v452
    %v465 = vshrl.u32 920167782, %v453
    %v466 = vor.u32 %v464, %v465
    %v467 = vshll.u32 920167782, %v452
    %v468 = vshrl.u32 1326507024, %v453
    %v469 = vor.u32 %v467, %v468
    %vm470 = vcmp.lt.s32.totalorder %v451, 1
    %vm471 = vcmp.lt.s32.totalorder %v451, 2
    %vm472 = vcmp.lt.s32.totalorder %v451, 3
    %vm473 = vcmp.lt.s32.totalorder %v451, 4
    %v474 = vsel %vm470, %v454, %v457
    %v475 = vsel %vm473, %v463, 2102212464
    %v476 = vsel %vm472, %v460, %v475
    %v477 = vsel %vm471, %v474, %v476
    %v478 = vsel %vm470, %v457, %v460
    %v479 = vsel %vm473, %v466, 920167782
    %v480 = vsel %vm472, %v463, %v479
    %v481 = vsel %vm471, %v478, %v480
    %v482 = vsel %vm470, %v460, %v463
    %v483 = vsel %vm473, %v469, 1326507024
    %v484 = vsel %vm472, %v466, %v483
    %v485 = vsel %vm471, %v482, %v484
    %v486 = vshll.u32 %v446, 8
    %v487 = vmul.u32.u64.compose %v486, %v485
    %v488 = vextract.low.u32 %v487
    %v489 = vextract.high.u32 %v487
    %v490 = vmul.u32.u64.compose %v486, %v481
    %v491 = vextract.low.u32 %v490
    %v492 = vextract.high.u32 %v490
    %v493 = vmul.u32 %v486, %v477
    %v494 = vadd.s32 %v489, %v491
    %vm495 = vc.u32 %v489, %v491
    %v496 = vadd.s32 %v492, 1
    %v497 = vsel %vm495, %v496, %v492
    %v498 = vadd.s32 %v493, %v497
    %v499 = vadd.s32 %v498, 536870912
    %v500 = vshrl.u32 %v499, 30
    %v501 = vshll.u32 %v500, 30
    %v502 = vsub.s32 %v498, %v501
    %vm503 = vcmp.lt.s32.totalorder %v502, 0
    %v504 = vsub.s32 0, %v502
    %v505 = vsel %vm503, %v504, %v502
    %v506 = vclz %v505
    %v507 = vsub.s32 %v506, 2
    %vm508 = vcmp.gt.s32.totalorder 0, %v507
    %v509 = vsel %vm508, 0, %v507
    %v510 = vsub.s32 32, %v509
    %v511 = vshll.u32 %v502, %v509
    %v512 = vshrl.u32 %v494, %v510
    %v513 = vor.u32 %v511, %v512
    %v514 = vsub.s32 4294967266, %v509
    %v515 = vadd.s32 %v514, 127
    %v516 = vshll.u32 %v515, 23
    %v517 = vor.u32 4788187, %v516
    %v518 = vand.u32 2147483647, %v517
    %v520 = vcvt.s32.f32 %v513
    %v521 = vmul.f32 %v520, %v518
    %v522 = vxor.u32 %v521, 2147483648
    %v523 = vsel %vm440, %v522, %v521
    %v524 = vsub.s32 4, %v500
    %v525 = vsel %vm440, %v524, %v500
    %v526 = vsel %vm439, %v125, %v523
    %v527 = vsel %vm439, 0, %v525
    %v528 = vcosq.f32.pop %v526
    %v529 = vsinq.f32.pop %v526
    %vm530 = vweird.f32 %v125
    %v531 = vadd.s32 %v527, 3
    %v532 = vand.u32 %v531, 3
    %vm533 = vcmp.lt.s32.totalorder %v532, 2
    %vm534 = vcmp.eq.s32.totalorder %v532, 0
    %v535 = vxor.u32 %v529, 2147483648
    %v536 = vsel %vm534, %v528, %v535
    %vm537 = vcmp.eq.s32.totalorder %v532, 2
    %v538 = vxor.u32 %v528, 2147483648
    %v539 = vsel %vm537, %v538, %v529
    %v540 = vsel %vm533, %v536, %v539
    %v541 = vsel %vm530, nan, %v540
    %v542 = vmul.f32 %v230, 0.088388346
    %v543 = vmul.f32 %v333, 0.088388346
    %v544 = vmul.f32 %v437, 0.088388346
    %v545 = vmul.f32 %v541, 0.088388346
    %546 = vst [vmem:[#allocation7] sm:$0xff] %v542
    %547 = vst [vmem:[#allocation7 + $0x10] sm:$0xff] %v543
    %548 = vst [vmem:[#allocation7 + $0x8] sm:$0xff] %v544
    %549 = vst [vmem:[#allocation7 + $0x18] sm:$0xff] %v545
    // Predicated region
    $region18: #{tpu_custom_call.1} parent=1 // pred_check
      _
    $region19: #{tpu_custom_call.1} parent=1 // pred_check_branch
      %551 = sbr.rel (0) target = $region21
    $region20: #{tpu_custom_call.1} parent=1 // pred_region
      %s553 = ssub.s32 512, 512
      %554 = vsyncadd [#allocation4], %s553
      %s555 = sshll.u32 [#allocation7], 4
      %s556 = int_to_ptr.vmem [resolvable:$true] %s555
      %561 = dma.vmem_to_hbm [thread:$0]  %s556, 512, %s2, [#allocation4], 256, 256, 16
    $region21: #{tpu_custom_call.1} parent=1 // pred_fallthru
      _
    // Predicated region
    $region22: #{tpu_custom_call.1} parent=1 // pred_check
      _
    $region23: #{tpu_custom_call.1} parent=1 // pred_check_branch
      %563 = sbr.rel (0) target = $region25
    $region24: #{tpu_custom_call.1} parent=1 // pred_region
      %564 = dma.done [#allocation4], 512
    $region25: #{tpu_custom_call.1} parent=1 // pred_fallthru
      _
    %565 = vsyncpa [#allocation3], 1
    %566 = vsyncpa [#allocation6], 1
    %567 = vsyncpa [#allocation4], 1

</llo_original>
